<compile_context>
chip_gen: v6e
topology: v6e:2x2x1
jax: 0.10.0
libtpu: 0.0.40
codegen_flags: <defaults>
</compile_context>

<pallas_src>
import math

import jax
import jax.numpy as jnp
from jax.experimental import pallas as pl
from jax.experimental.pallas import tpu as pltpu

NEG_SLOPE = 0.01  # torch.nn.LeakyReLU default


def _concept_kernel(x_ref, wpos_ref, wneg_ref, bpos_ref, bneg_ref,
                    wpp_ref, wpn_ref, sel_ref, exp_ref, bp_ref,
                    emb_ref, pred_ref):
    x = x_ref[...]                                                       # (TB, F)

    # Fused context generators: LeakyReLU(x @ W + b); pos/neg halves separate
    # so no mid-vreg lane split is ever needed.
    ctx_p = jnp.dot(x, wpos_ref[...], preferred_element_type=jnp.float32) + bpos_ref[...]
    ctx_n = jnp.dot(x, wneg_ref[...], preferred_element_type=jnp.float32) + bneg_ref[...]
    ctx_p = jnp.where(ctx_p > 0, ctx_p, NEG_SLOPE * ctx_p)              # (TB, Tn)
    ctx_n = jnp.where(ctx_n > 0, ctx_n, NEG_SLOPE * ctx_n)              # (TB, Tn)

    # Shared prob predictor: per-concept <context, Wp> + bp, then sigmoid.
    # VPU multiply with Wp tiled per concept, segmented lane-sum via a
    # block-diagonal ones selector (single small MXU matmul, not N=1).
    prod = ctx_p * wpp_ref[...] + ctx_n * wpn_ref[...]                   # (TB, Tn)
    logits = jnp.dot(prod, sel_ref[...],
                     preferred_element_type=jnp.float32) + bp_ref[0, 0]  # (TB, Cg)
    p = jax.nn.sigmoid(logits)
    pred_ref[0] = p.astype(pred_ref.dtype)

    # Broadcast each concept's prob across its E embedding lanes and mix:
    #   emb = neg + p * (pos - neg)  ==  pos*p + neg*(1-p)
    p_wide = jnp.dot(p, exp_ref[...], preferred_element_type=jnp.float32)  # (TB, Tn)
    emb_ref[...] = (ctx_n + p_wide * (ctx_p - ctx_n)).astype(emb_ref.dtype)


def _round_up(v, m):
    return (v + m - 1) // m * m


def _pad_axis(a, axis, new_size):
    pad = new_size - a.shape[axis]
    if pad == 0:
        return a
    widths = [(0, 0)] * a.ndim
    widths[axis] = (0, pad)
    return jnp.pad(a, widths)


def concept_embedding_forward(x, W, b, Wp, bp, *, block_b=128, target_n=512):
    """x: (B, F); W: (C, F, 2E); b: (C, 2E); Wp: (2E, 1); bp: (1, 1).
    Returns (c_emb (B, C, E), c_pred (B, C)).  Inference path only."""
    B, F = x.shape
    C, _, twoE = W.shape
    E = twoE // 2
    f32 = jnp.float32

    # ---- tiling -------------------------------------------------------------
    # Concept-group size Cg: single tile if C*E is small; otherwise a 128-lane
    # aligned group near target_n lanes so the emb output tile stays lane-dense.
    if C * E <= max(128, target_n):
        Cg = C
    else:
        base = 128 // math.gcd(E, 128)              # smallest Cg with Cg*E % 128 == 0
        Cg = base * max(1, target_n // (base * E))
    Cp = _round_up(C, Cg)
    n_tiles = Cp // Cg
    Tn = Cg * E

    TB = min(_round_up(B, 8), block_b)
    Bp = _round_up(B, TB)
    nb = Bp // TB

    # ---- operand layout -----------------------------------------------------
    # Pos / neg halves as separate (F, C*E) matrices (concept-major columns).
    Wpos = jnp.transpose(W[:, :, :E], (1, 0, 2)).reshape(F, C * E)
    Wneg = jnp.transpose(W[:, :, E:], (1, 0, 2)).reshape(F, C * E)
    bpos = b[:, :E].reshape(1, C * E)
    bneg = b[:, E:].reshape(1, C * E)

    Wpos = _pad_axis(Wpos.astype(f32), 1, Cp * E)
    Wneg = _pad_axis(Wneg.astype(f32), 1, Cp * E)
    bpos = _pad_axis(bpos.astype(f32), 1, Cp * E)
    bneg = _pad_axis(bneg.astype(f32), 1, Cp * E)
    x_p = _pad_axis(x.astype(f32), 0, Bp)

    # Shared prob-predictor operands (identical for every concept-group tile).
    wpp_row = jnp.tile(Wp[:E, 0], Cg).reshape(1, Tn).astype(f32)
    wpn_row = jnp.tile(Wp[E:, 0], Cg).reshape(1, Tn).astype(f32)
    seg = (jnp.arange(Tn) // E)[:, None] == jnp.arange(Cg)[None, :]
    ones_sel = seg.astype(f32)                      # (Tn, Cg): segmented lane-sum
    ones_exp = ones_sel.T                           # (Cg, Tn): per-concept broadcast
    bp_s = bp.reshape(1, 1).astype(f32)

    # ---- VMEM budget hint (double-buffered blocks + intermediates) ----------
    vmem_bytes = 4 * (
        2 * TB * F + 2 * 2 * F * Tn + 4 * Tn + 2 * Tn * Cg
        + 2 * TB * Tn + 2 * TB * Cg + 6 * TB * Tn)
    vmem_limit = int(min(max(2 * vmem_bytes, 16 << 20), 64 << 20))

    emb_flat, pred_cm = pl.pallas_call(
        _concept_kernel,
        out_shape=(
            jax.ShapeDtypeStruct((Bp, Cp * E), x.dtype),
            jax.ShapeDtypeStruct((n_tiles, Bp, Cg), x.dtype),
        ),
        grid_spec=pltpu.PrefetchScalarGridSpec(
            num_scalar_prefetch=0,
            grid=(nb, n_tiles),
            in_specs=[
                pl.BlockSpec((TB, F), lambda ib, n: (ib, 0)),          # x
                pl.BlockSpec((F, Tn), lambda ib, n: (0, n)),           # Wpos
                pl.BlockSpec((F, Tn), lambda ib, n: (0, n)),           # Wneg
                pl.BlockSpec((1, Tn), lambda ib, n: (0, n)),           # bpos
                pl.BlockSpec((1, Tn), lambda ib, n: (0, n)),           # bneg
                pl.BlockSpec((1, Tn), lambda ib, n: (0, 0)),           # Wp pos row (shared)
                pl.BlockSpec((1, Tn), lambda ib, n: (0, 0)),           # Wp neg row (shared)
                pl.BlockSpec((Tn, Cg), lambda ib, n: (0, 0)),          # ones selector (shared)
                pl.BlockSpec((Cg, Tn), lambda ib, n: (0, 0)),          # ones expander (shared)
                pl.BlockSpec(memory_space=pltpu.MemorySpace.SMEM),     # bp scalar
            ],
            out_specs=[
                pl.BlockSpec((TB, Tn), lambda ib, n: (ib, n)),         # emb, batch-major
                pl.BlockSpec((1, TB, Cg), lambda ib, n: (n, ib, 0)),   # pred
            ],
        ),
        compiler_params=pltpu.CompilerParams(
            dimension_semantics=("parallel", "parallel"),
            vmem_limit_bytes=vmem_limit),
    )(x_p, Wpos, Wneg, bpos, bneg, wpp_row, wpn_row, ones_sel, ones_exp, bp_s)

    # Batch-major outputs: emb is a pure reshape (no transpose over HBM);
    # pred is tiny, so its transpose is negligible.
    c_emb = emb_flat[:B, :C * E].reshape(B, C, E)
    c_pred = jnp.transpose(pred_cm, (1, 0, 2)).reshape(Bp, Cp)[:B, :C]
    return c_emb, c_pred


def _reference(x, W, b, Wp, bp):
    # Pure-JAX reference of the PyTorch forward (no interventions).
    ctx = jnp.einsum("bf,cfe->cbe", x, W) + b[:, None, :]              # (C, B, 2E)
    ctx = jnp.where(ctx > 0, ctx, NEG_SLOPE * ctx)
    p = jax.nn.sigmoid(jnp.einsum("cbe,eo->cbo", ctx, Wp) + bp[0, 0])  # (C, B, 1)
    E = W.shape[-1] // 2
    emb = ctx[..., :E] * p + ctx[..., E:] * (1.0 - p)                  # (C, B, E)
    return jnp.transpose(emb, (1, 0, 2)), jnp.transpose(p[..., 0], (1, 0))


def _run_case(key, B, F, C, E):
    twoE = 2 * E
    kx, kw, kb, kwp, kbp = jax.random.split(key, 5)
    x = jax.random.normal(kx, (B, F), dtype=jnp.float32)
    W = jax.random.normal(kw, (C, F, twoE), dtype=jnp.float32) * 0.1
    b = jax.random.normal(kb, (C, twoE), dtype=jnp.float32) * 0.1
    Wp = jax.random.normal(kwp, (twoE, 1), dtype=jnp.float32) * 0.1
    bp = jax.random.normal(kbp, (1, 1), dtype=jnp.float32) * 0.1

    c_emb, c_pred = concept_embedding_forward(x, W, b, Wp, bp)
    jax.block_until_ready((c_emb, c_pred))

    ref_emb, ref_pred = _reference(x, W, b, Wp, bp)
    assert c_emb.shape == (B, C, E)
    assert c_pred.shape == (B, C)
    assert jnp.allclose(c_emb, ref_emb, atol=1e-5, rtol=1e-5)
    assert jnp.allclose(c_pred, ref_pred, atol=1e-5, rtol=1e-5)


if __name__ == "__main__":
    key = jax.random.PRNGKey(0)
    k1, k2 = jax.random.split(key, 2)

    # Primary small case (single concept tile, single batch tile).
    _run_case(k1, B=8, F=32, C=4, E=16)
    # Ragged case exercising batch/concept padding and the multi-tile grid path.
    _run_case(k2, B=10, F=48, C=40, E=16)

    print("KERNEL_OK")
</pallas_src>

<mosaic_0001>
module attributes {stable_mosaic.version = 11 : i64} {
  func.func @_concept_kernel(%arg0: i32, %arg1: i32, %arg2: memref<8x32xf32, #tpu.memory_space<vmem>>, %arg3: memref<32x64xf32, #tpu.memory_space<vmem>>, %arg4: memref<32x64xf32, #tpu.memory_space<vmem>>, %arg5: memref<1x64xf32, #tpu.memory_space<vmem>>, %arg6: memref<1x64xf32, #tpu.memory_space<vmem>>, %arg7: memref<1x64xf32, #tpu.memory_space<vmem>>, %arg8: memref<1x64xf32, #tpu.memory_space<vmem>>, %arg9: memref<64x4xf32, #tpu.memory_space<vmem>>, %arg10: memref<4x64xf32, #tpu.memory_space<vmem>>, %arg11: memref<1x1xf32, #tpu.memory_space<smem>>, %arg12: memref<8x64xf32, #tpu.memory_space<vmem>>, %arg13: memref<1x8x4xf32, #tpu.memory_space<vmem>>) attributes {dimension_semantics = [#tpu.dimension_semantics<parallel>, #tpu.dimension_semantics<parallel>], iteration_bounds = array<i64: 1, 1>, scalar_prefetch = 0 : i64, scratch_operands = 0 : i64, tpu.core_type = #tpu.core_type<tc>, window_params = [{transform_indices = @transform_0, window_bounds = array<i64: 8, 32>}, {transform_indices = @transform_1, window_bounds = array<i64: 32, 64>}, {transform_indices = @transform_2, window_bounds = array<i64: 32, 64>}, {transform_indices = @transform_3, window_bounds = array<i64: 1, 64>}, {transform_indices = @transform_4, window_bounds = array<i64: 1, 64>}, {pipeline_mode = #tpu.pipeline_mode<synchronous>, transform_indices = @transform_5, window_bounds = array<i64: 1, 64>}, {pipeline_mode = #tpu.pipeline_mode<synchronous>, transform_indices = @transform_6, window_bounds = array<i64: 1, 64>}, {pipeline_mode = #tpu.pipeline_mode<synchronous>, transform_indices = @transform_7, window_bounds = array<i64: 64, 4>}, {pipeline_mode = #tpu.pipeline_mode<synchronous>, transform_indices = @transform_8, window_bounds = array<i64: 4, 64>}, {transform_indices = @transform_9, window_bounds = array<i64: 1, 1>}, {transform_indices = @transform_10, window_bounds = array<i64: 8, 64>}, {transform_indices = @transform_11, window_bounds = array<i64: 1, 8, 4>}]} {
    %c0 = arith.constant 0 : index
    %c0_0 = arith.constant 0 : index
    %0 = vector.load %arg2[%c0, %c0_0] : memref<8x32xf32, #tpu.memory_space<vmem>>, vector<8x32xf32>
    %c0_1 = arith.constant 0 : index
    %c0_2 = arith.constant 0 : index
    %1 = vector.load %arg3[%c0_1, %c0_2] : memref<32x64xf32, #tpu.memory_space<vmem>>, vector<32x64xf32>
    %cst = arith.constant dense<0.000000e+00> : vector<8x64xf32>
    %2 = tpu.matmul %0, %1, %cst {dimension_numbers = #tpu.dot_dimension_numbers<[1], [0], [0], [1], [0, 0, 1, 1], [], []>} : vector<8x32xf32>, vector<32x64xf32>, vector<8x64xf32> -> vector<8x64xf32>
    %c0_3 = arith.constant 0 : index
    %c0_4 = arith.constant 0 : index
    %3 = vector.load %arg5[%c0_3, %c0_4] : memref<1x64xf32, #tpu.memory_space<vmem>>, vector<1x64xf32>
    %4 = vector.broadcast %3 : vector<1x64xf32> to vector<8x64xf32>
    %5 = arith.addf %2, %4 : vector<8x64xf32>
    %c0_5 = arith.constant 0 : index
    %c0_6 = arith.constant 0 : index
    %6 = vector.load %arg4[%c0_5, %c0_6] : memref<32x64xf32, #tpu.memory_space<vmem>>, vector<32x64xf32>
    %cst_7 = arith.constant dense<0.000000e+00> : vector<8x64xf32>
    %7 = tpu.matmul %0, %6, %cst_7 {dimension_numbers = #tpu.dot_dimension_numbers<[1], [0], [0], [1], [0, 0, 1, 1], [], []>} : vector<8x32xf32>, vector<32x64xf32>, vector<8x64xf32> -> vector<8x64xf32>
    %c0_8 = arith.constant 0 : index
    %c0_9 = arith.constant 0 : index
    %8 = vector.load %arg6[%c0_8, %c0_9] : memref<1x64xf32, #tpu.memory_space<vmem>>, vector<1x64xf32>
    %9 = vector.broadcast %8 : vector<1x64xf32> to vector<8x64xf32>
    %10 = arith.addf %7, %9 : vector<8x64xf32>
    %cst_10 = arith.constant 0.000000e+00 : f32
    %11 = vector.broadcast %cst_10 : f32 to vector<8x64xf32>
    %12 = arith.cmpf ogt, %5, %11 : vector<8x64xf32>
    %cst_11 = arith.constant 0.00999999977 : f32
    %13 = vector.broadcast %cst_11 : f32 to vector<8x64xf32>
    %14 = arith.mulf %13, %5 : vector<8x64xf32>
    %15 = arith.select %12, %5, %14 : vector<8x64xi1>, vector<8x64xf32>
    %cst_12 = arith.constant 0.000000e+00 : f32
    %16 = vector.broadcast %cst_12 : f32 to vector<8x64xf32>
    %17 = arith.cmpf ogt, %10, %16 : vector<8x64xf32>
    %cst_13 = arith.constant 0.00999999977 : f32
    %18 = vector.broadcast %cst_13 : f32 to vector<8x64xf32>
    %19 = arith.mulf %18, %10 : vector<8x64xf32>
    %20 = arith.select %17, %10, %19 : vector<8x64xi1>, vector<8x64xf32>
    %c0_14 = arith.constant 0 : index
    %c0_15 = arith.constant 0 : index
    %21 = vector.load %arg7[%c0_14, %c0_15] : memref<1x64xf32, #tpu.memory_space<vmem>>, vector<1x64xf32>
    %22 = vector.broadcast %21 : vector<1x64xf32> to vector<8x64xf32>
    %23 = arith.mulf %15, %22 : vector<8x64xf32>
    %c0_16 = arith.constant 0 : index
    %c0_17 = arith.constant 0 : index
    %24 = vector.load %arg8[%c0_16, %c0_17] : memref<1x64xf32, #tpu.memory_space<vmem>>, vector<1x64xf32>
    %25 = vector.broadcast %24 : vector<1x64xf32> to vector<8x64xf32>
    %26 = arith.mulf %20, %25 : vector<8x64xf32>
    %27 = arith.addf %23, %26 : vector<8x64xf32>
    %c0_18 = arith.constant 0 : index
    %c0_19 = arith.constant 0 : index
    %28 = vector.load %arg9[%c0_18, %c0_19] : memref<64x4xf32, #tpu.memory_space<vmem>>, vector<64x4xf32>
    %cst_20 = arith.constant dense<0.000000e+00> : vector<8x4xf32>
    %29 = tpu.matmul %27, %28, %cst_20 {dimension_numbers = #tpu.dot_dimension_numbers<[1], [0], [0], [1], [0, 0, 1, 1], [], []>} : vector<8x64xf32>, vector<64x4xf32>, vector<8x4xf32> -> vector<8x4xf32>
    %c0_21 = arith.constant 0 : index
    %c0_22 = arith.constant 0 : index
    %30 = memref.load %arg11[%c0_21, %c0_22] : memref<1x1xf32, #tpu.memory_space<smem>>
    %31 = vector.broadcast %30 : f32 to vector<8x4xf32>
    %32 = arith.addf %29, %31 : vector<8x4xf32>
    %33 = arith.negf %32 : vector<8x4xf32>
    %34 = math.exp %33 : vector<8x4xf32>
    %cst_23 = arith.constant 1.000000e+00 : f32
    %35 = vector.broadcast %cst_23 : f32 to vector<8x4xf32>
    %36 = arith.addf %35, %34 : vector<8x4xf32>
    %37 = arith.divf %35, %36 : vector<8x4xf32>
    %c0_24 = arith.constant 0 : index
    %c0_25 = arith.constant 0 : index
    %c0_26 = arith.constant 0 : index
    %38 = vector.load %arg13[%c0_24, %c0_25, %c0_26] : memref<1x8x4xf32, #tpu.memory_space<vmem>>, vector<1x8x4xf32>
    %39 = vector.shape_cast %38 : vector<1x8x4xf32> to vector<8x4xf32>
    %40 = vector.shape_cast %37 : vector<8x4xf32> to vector<1x8x4xf32>
    tpu.vector_store %arg13[%c0_24, %c0_25, %c0_26], %40 {strides = array<i32>} : memref<1x8x4xf32, #tpu.memory_space<vmem>>, vector<1x8x4xf32>,
    %c0_27 = arith.constant 0 : index
    %c0_28 = arith.constant 0 : index
    %41 = vector.load %arg10[%c0_27, %c0_28] : memref<4x64xf32, #tpu.memory_space<vmem>>, vector<4x64xf32>
    %cst_29 = arith.constant dense<0.000000e+00> : vector<8x64xf32>
    %42 = tpu.matmul %37, %41, %cst_29 {dimension_numbers = #tpu.dot_dimension_numbers<[1], [0], [0], [1], [0, 0, 1, 1], [], []>} : vector<8x4xf32>, vector<4x64xf32>, vector<8x64xf32> -> vector<8x64xf32>
    %43 = arith.subf %15, %20 : vector<8x64xf32>
    %44 = arith.mulf %42, %43 : vector<8x64xf32>
    %45 = arith.addf %20, %44 : vector<8x64xf32>
    %c0_30 = arith.constant 0 : index
    %c0_31 = arith.constant 0 : index
    %46 = vector.load %arg12[%c0_30, %c0_31] : memref<8x64xf32, #tpu.memory_space<vmem>>, vector<8x64xf32>
    tpu.vector_store %arg12[%c0_30, %c0_31], %45 {strides = array<i32>} : memref<8x64xf32, #tpu.memory_space<vmem>>, vector<8x64xf32>,
    return
  }
  func.func @transform_0(%arg0: i32, %arg1: i32) -> (i32, i32) {
    %c0_i32 = arith.constant 0 : i32
    %c0_i32_0 = arith.constant 0 : i32
    return %arg0, %c0_i32 : i32, i32
  }
  func.func @transform_1(%arg0: i32, %arg1: i32) -> (i32, i32) {
    %c0_i32 = arith.constant 0 : i32
    %c0_i32_0 = arith.constant 0 : i32
    return %c0_i32, %arg1 : i32, i32
  }
  func.func @transform_2(%arg0: i32, %arg1: i32) -> (i32, i32) {
    %c0_i32 = arith.constant 0 : i32
    %c0_i32_0 = arith.constant 0 : i32
    return %c0_i32, %arg1 : i32, i32
  }
  func.func @transform_3(%arg0: i32, %arg1: i32) -> (i32, i32) {
    %c0_i32 = arith.constant 0 : i32
    %c0_i32_0 = arith.constant 0 : i32
    return %c0_i32, %arg1 : i32, i32
  }
  func.func @transform_4(%arg0: i32, %arg1: i32) -> (i32, i32) {
    %c0_i32 = arith.constant 0 : i32
    %c0_i32_0 = arith.constant 0 : i32
    return %c0_i32, %arg1 : i32, i32
  }
  func.func @transform_5(%arg0: i32, %arg1: i32) -> (i32, i32) {
    %c0_i32 = arith.constant 0 : i32
    %c0_i32_0 = arith.constant 0 : i32
    %c0_i32_1 = arith.constant 0 : i32
    return %c0_i32, %c0_i32_0 : i32, i32
  }
  func.func @transform_6(%arg0: i32, %arg1: i32) -> (i32, i32) {
    %c0_i32 = arith.constant 0 : i32
    %c0_i32_0 = arith.constant 0 : i32
    %c0_i32_1 = arith.constant 0 : i32
    return %c0_i32, %c0_i32_0 : i32, i32
  }
  func.func @transform_7(%arg0: i32, %arg1: i32) -> (i32, i32) {
    %c0_i32 = arith.constant 0 : i32
    %c0_i32_0 = arith.constant 0 : i32
    %c0_i32_1 = arith.constant 0 : i32
    return %c0_i32, %c0_i32_0 : i32, i32
  }
  func.func @transform_8(%arg0: i32, %arg1: i32) -> (i32, i32) {
    %c0_i32 = arith.constant 0 : i32
    %c0_i32_0 = arith.constant 0 : i32
    %c0_i32_1 = arith.constant 0 : i32
    return %c0_i32, %c0_i32_0 : i32, i32
  }
  func.func @transform_9(%arg0: i32, %arg1: i32) -> (i32, i32) {
    %c0_i32 = arith.constant 0 : i32
    %c0_i32_0 = arith.constant 0 : i32
    %c0_i32_1 = arith.constant 0 : i32
    return %c0_i32, %c0_i32_0 : i32, i32
  }
  func.func @transform_10(%arg0: i32, %arg1: i32) -> (i32, i32) {
    %c0_i32 = arith.constant 0 : i32
    return %arg0, %arg1 : i32, i32
  }
  func.func @transform_11(%arg0: i32, %arg1: i32) -> (i32, i32, i32) {
    %c0_i32 = arith.constant 0 : i32
    %c0_i32_0 = arith.constant 0 : i32
    return %arg1, %arg0, %c0_i32 : i32, i32, i32
  }
}

</mosaic_0001>

<llo_original>
// kernel: tpu_custom_call.1
$region0: #{tpu_custom_call.1}
  #allocation0 [shape = 'u32[]', space=smem, size = 0x4, offset = 0x4, fixed_abs, tag = 'smem constant byte address 0x4 - core index']
  #allocation1 [shape = 'u32[144,128]{1,0:T(1,128)}', space=vmem, size = 0x12000, scoped, tag = 'internal scratch']
  #allocation2 [shape = 'f32[1,1]{1,0:T(1,128)S(6)}', space=smem, size = 0x200, scoped, tag = 'scoped memory for tpu_custom_call.1']
  %s0 = inlined_call_operand.hbm [shape: f32[8,32], index: 0, kind: input, shape index: {}]
  %s1 = inlined_call_operand.vmem [shape: f32[32,64], index: 1, kind: input, shape index: {}]
  %s2 = inlined_call_operand.vmem [shape: f32[32,64], index: 2, kind: input, shape index: {}]
  %s3 = inlined_call_operand.vmem [shape: f32[1,64], index: 3, kind: input, shape index: {}]
  %s4 = inlined_call_operand.vmem [shape: f32[1,64], index: 4, kind: input, shape index: {}]
  %s5 = inlined_call_operand.vmem [shape: f32[1,64], index: 5, kind: input, shape index: {}]
  %s6 = inlined_call_operand.vmem [shape: f32[1,64], index: 6, kind: input, shape index: {}]
  %s7 = inlined_call_operand.vmem [shape: f32[64,4], index: 7, kind: input, shape index: {}]
  %s8 = inlined_call_operand.vmem [shape: f32[4,64], index: 8, kind: input, shape index: {}]
  %s9 = inlined_call_operand.<no memory space> [shape: f32[1,1], index: 9, kind: input, shape index: {}]
  %s10 = inlined_call_operand.hbm [shape: f32[8,64], index: 10, kind: output, shape index: {0}]
  %s11 = inlined_call_operand.vmem [shape: f32[1,8,4], index: 11, kind: output, shape index: {1}]
  %12 = xla_tuple %s10, %s11
  %s13 = sld [smem:[#allocation0]]
  $region62: #{tpu_custom_call.1} parent=0
    _
  %s15 = ssub.s32 1, %s13
  %s16 = scalar_select 0, %s15, %s13
  %17 = sst [smem:[#allocation2]] %s9
  $region1: #{tpu_custom_call.1} parent=0
    #allocation3 [shape = 'u8[4096]{0}', space=vmem, size = 0x1000, scoped, tag = 'input window, operand 0, single buffered']
    #allocation4 [shape = 's32[1]{0}', space=sflag, size = 0x4, scoped, tag = 'scoped memory for tpu_custom_call.1']
    #allocation5 [shape = 's32[1]{0}', space=sflag, size = 0x4, scoped, tag = 'scoped memory for tpu_custom_call.1']
    #allocation6 [shape = 'u8[4096]{0}', space=vmem, size = 0x1000, scoped, tag = 'output window, operand 0, single buffered']
    %18 = vsyncpa [#allocation4], 0
    %19 = vsyncpa [#allocation5], 0
    // Predicated region
    $region2: #{tpu_custom_call.1} parent=1 // pred_check
      _
    $region3: #{tpu_custom_call.1} parent=1 // pred_check_branch
      %21 = sbr.rel (0) target = $region5
    $region4: #{tpu_custom_call.1} parent=1 // pred_region
      %s23 = ssub.s32 128, 128
      %24 = vsyncadd [#allocation4], %s23
      %s26 = sshll.u32 [#allocation3], 4
      %s27 = int_to_ptr.vmem [resolvable:$true] %s26
      %29 = dma.hbm_to_vmem [thread:$0]  %s0, 128, %s27, [#allocation4]
    $region5: #{tpu_custom_call.1} parent=1 // pred_fallthru
      _
    // Predicated region
    $region6: #{tpu_custom_call.1} parent=1 // pred_check
      _
    $region7: #{tpu_custom_call.1} parent=1 // pred_check_branch
      %31 = sbr.rel (0) target = $region9
    $region8: #{tpu_custom_call.1} parent=1 // pred_region
      _
    $region9: #{tpu_custom_call.1} parent=1 // pred_fallthru
      _
    // Predicated region
    $region10: #{tpu_custom_call.1} parent=1 // pred_check
      _
    $region11: #{tpu_custom_call.1} parent=1 // pred_check_branch
      %33 = sbr.rel (0) target = $region13
    $region12: #{tpu_custom_call.1} parent=1 // pred_region
      _
    $region13: #{tpu_custom_call.1} parent=1 // pred_fallthru
      _
    // Predicated region
    $region14: #{tpu_custom_call.1} parent=1 // pred_check
      _
    $region15: #{tpu_custom_call.1} parent=1 // pred_check_branch
      %35 = sbr.rel (0) target = $region17
    $region16: #{tpu_custom_call.1} parent=1 // pred_region
      _
    $region17: #{tpu_custom_call.1} parent=1 // pred_fallthru
      _
    // Predicated region
    $region18: #{tpu_custom_call.1} parent=1 // pred_check
      _
    $region19: #{tpu_custom_call.1} parent=1 // pred_check_branch
      %37 = sbr.rel (0) target = $region21
    $region20: #{tpu_custom_call.1} parent=1 // pred_region
      _
    $region21: #{tpu_custom_call.1} parent=1 // pred_fallthru
      _
    // Predicated region
    $region22: #{tpu_custom_call.1} parent=1 // pred_check
      _
    $region23: #{tpu_custom_call.1} parent=1 // pred_check_branch
      %39 = sbr.rel (0) target = $region25
    $region24: #{tpu_custom_call.1} parent=1 // pred_region
      _
    $region25: #{tpu_custom_call.1} parent=1 // pred_fallthru
      _
    // Predicated region
    $region26: #{tpu_custom_call.1} parent=1 // pred_check
      _
    $region27: #{tpu_custom_call.1} parent=1 // pred_check_branch
      %41 = sbr.rel (0) target = $region29
    $region28: #{tpu_custom_call.1} parent=1 // pred_region
      _
    $region29: #{tpu_custom_call.1} parent=1 // pred_fallthru
      _
    // Predicated region
    $region30: #{tpu_custom_call.1} parent=1 // pred_check
      _
    $region31: #{tpu_custom_call.1} parent=1 // pred_check_branch
      %43 = sbr.rel (0) target = $region33
    $region32: #{tpu_custom_call.1} parent=1 // pred_region
      _
    $region33: #{tpu_custom_call.1} parent=1 // pred_fallthru
      _
    // Predicated region
    $region34: #{tpu_custom_call.1} parent=1 // pred_check
      _
    $region35: #{tpu_custom_call.1} parent=1 // pred_check_branch
      %45 = sbr.rel (0) target = $region37
    $region36: #{tpu_custom_call.1} parent=1 // pred_region
      _
    $region37: #{tpu_custom_call.1} parent=1 // pred_fallthru
      _
    // Predicated region
    $region38: #{tpu_custom_call.1} parent=1 // pred_check
      _
    $region39: #{tpu_custom_call.1} parent=1 // pred_check_branch
      %47 = sbr.rel (0) target = $region41
    $region40: #{tpu_custom_call.1} parent=1 // pred_region
      _
    $region41: #{tpu_custom_call.1} parent=1 // pred_fallthru
      _
    // Predicated region
    $region42: #{tpu_custom_call.1} parent=1 // pred_check
      _
    $region43: #{tpu_custom_call.1} parent=1 // pred_check_branch
      %49 = sbr.rel (0) target = $region45
    $region44: #{tpu_custom_call.1} parent=1 // pred_region
      %50 = dma.done [#allocation4], 128
    $region45: #{tpu_custom_call.1} parent=1 // pred_fallthru
      _
    %v51 = vld [vmem:[#allocation3] sm:$0xff]
    %v52 = vld [vmem:[%s1] sm:$0xff]
    %v53 = vld [vmem:[%s1 + $0x8] sm:$0xff]
    %v54 = vld [vmem:[%s1 + $0x10] sm:$0xff]
    %v55 = vld [vmem:[%s1 + $0x18] sm:$0xff]
    %v56 = vld [vmem:[%s3] sm:$0x1]
    %v58 = vlaneseq
    %v59 = vshrl.u32 %v58, 7
    %v60 = vsub.s32 0, %v59
    %v61 = vrot.slane %v56, %v60
    %vm63 = vcmask 261120
    %v65 = vsel %vm63, %v51, 0
    %67 = vmatprep.subr.mxu0 0.0
    %68 = vmatpush1.msra.mxu0 0.0
    %69 = vmatprep.subr.mxu0 0.0
    %70 = vmatpush1.msra.mxu0 0.0
    %71 = vmatprep.subr.mxu0 0.0
    %72 = vmatpush1.msra.mxu0 0.0
    %73 = vmatprep.subr.mxu0 0.0
    %74 = vmatpush1.msra.mxu0 0.0
    %75 = vmatprep.subr.mxu0 0.0
    %76 = vmatpush1.msra.mxu0 0.0
    %77 = vmatprep.subr.mxu0 0.0
    %78 = vmatpush1.msra.mxu0 0.0
    %79 = vmatprep.subr.mxu0 0.0
    %80 = vmatpush1.msra.mxu0 0.0
    %81 = vmatprep.subr.mxu0 0.0
    %82 = vmatpush1.msra.mxu0 0.0
    %83 = vmatprep.subr.mxu0 0.0
    %84 = vmatpush1.msra.mxu0 0.0
    %85 = vmatprep.subr.mxu0 0.0
    %86 = vmatpush1.msra.mxu0 0.0
    %87 = vmatprep.subr.mxu0 0.0
    %88 = vmatpush1.msra.mxu0 0.0
    %89 = vmatprep.subr.mxu0 0.0
    %90 = vmatpush1.msra.mxu0 0.0
    %91 = vmatprep.subr.mxu0 0.0
    %92 = vmatpush1.msra.mxu0 %v55
    %93 = vmatprep.subr.mxu0 0.0
    %94 = vmatpush1.msra.mxu0 %v54
    %95 = vmatprep.subr.mxu0 0.0
    %96 = vmatpush1.msra.mxu0 %v53
    %97 = vmatprep.subr.mxu0 0.0
    %98 = vmatpush1.msra.mxu0 %v52
    %99 = vmatprep.subr.mxu0 0.0
    %100 = vmatpush2.msra.mxu0 0.0
    %101 = vmatprep.subr.mxu0 0.0
    %102 = vmatpush2.msra.mxu0 0.0
    %103 = vmatprep.subr.mxu0 0.0
    %104 = vmatpush2.msra.mxu0 0.0
    %105 = vmatprep.subr.mxu0 0.0
    %106 = vmatpush2.msra.mxu0 0.0
    %107 = vmatprep.subr.mxu0 0.0
    %108 = vmatpush2.msra.mxu0 0.0
    %109 = vmatprep.subr.mxu0 0.0
    %110 = vmatpush2.msra.mxu0 0.0
    %111 = vmatprep.subr.mxu0 0.0
    %112 = vmatpush2.msra.mxu0 0.0
    %113 = vmatprep.subr.mxu0 0.0
    %114 = vmatpush2.msra.mxu0 0.0
    %115 = vmatprep.subr.mxu0 0.0
    %116 = vmatpush2.msra.mxu0 0.0
    %117 = vmatprep.subr.mxu0 0.0
    %118 = vmatpush2.msra.mxu0 0.0
    %119 = vmatprep.subr.mxu0 0.0
    %120 = vmatpush2.msra.mxu0 0.0
    %121 = vmatprep.subr.mxu0 0.0
    %122 = vmatpush2.msra.mxu0 0.0
    %123 = vmatprep.subr.mxu0 0.0
    %124 = vmatpush2.msra.mxu0 0.0
    %125 = vmatprep.subr.mxu0 0.0
    %126 = vmatpush2.msra.mxu0 0.0
    %127 = vmatprep.subr.mxu0 0.0
    %128 = vmatpush2.msra.mxu0 0.0
    %129 = vmatprep.subr.mxu0 0.0
    %130 = vmatpush2.msra.mxu0 0.0
    %131 = vmatprep.mubr.f32.mxu0 0.0
    %132 = vmatmul.mubr.f32.gmra.mxu0 %v65
    %v133 = vpop.f32.mrf.mxu0
    %v134 = vadd.f32 %v61, %v133
    %v135 = vpop.f32.mrf.mxu0
    %136 = vdwg.mxu0
    %v137 = vld [vmem:[%s2] sm:$0xff]
    %v138 = vld [vmem:[%s2 + $0x8] sm:$0xff]
    %v139 = vld [vmem:[%s2 + $0x10] sm:$0xff]
    %v140 = vld [vmem:[%s2 + $0x18] sm:$0xff]
    %v141 = vld [vmem:[%s4] sm:$0x1]
    %v143 = vlaneseq
    %v144 = vshrl.u32 %v143, 7
    %v145 = vsub.s32 0, %v144
    %v146 = vrot.slane %v141, %v145
    %148 = vmatprep.subr.mxu0 0.0
    %149 = vmatpush1.msra.mxu0 0.0
    %150 = vmatprep.subr.mxu0 0.0
    %151 = vmatpush1.msra.mxu0 0.0
    %152 = vmatprep.subr.mxu0 0.0
    %153 = vmatpush1.msra.mxu0 0.0
    %154 = vmatprep.subr.mxu0 0.0
    %155 = vmatpush1.msra.mxu0 0.0
    %156 = vmatprep.subr.mxu0 0.0
    %157 = vmatpush1.msra.mxu0 0.0
    %158 = vmatprep.subr.mxu0 0.0
    %159 = vmatpush1.msra.mxu0 0.0
    %160 = vmatprep.subr.mxu0 0.0
    %161 = vmatpush1.msra.mxu0 0.0
    %162 = vmatprep.subr.mxu0 0.0
    %163 = vmatpush1.msra.mxu0 0.0
    %164 = vmatprep.subr.mxu0 0.0
    %165 = vmatpush1.msra.mxu0 0.0
    %166 = vmatprep.subr.mxu0 0.0
    %167 = vmatpush1.msra.mxu0 0.0
    %168 = vmatprep.subr.mxu0 0.0
    %169 = vmatpush1.msra.mxu0 0.0
    %170 = vmatprep.subr.mxu0 0.0
    %171 = vmatpush1.msra.mxu0 0.0
    %172 = vmatprep.subr.mxu0 0.0
    %173 = vmatpush1.msra.mxu0 %v140
    %174 = vmatprep.subr.mxu0 0.0
    %175 = vmatpush1.msra.mxu0 %v139
    %176 = vmatprep.subr.mxu0 0.0
    %177 = vmatpush1.msra.mxu0 %v138
    %178 = vmatprep.subr.mxu0 0.0
    %179 = vmatpush1.msra.mxu0 %v137
    %180 = vmatprep.subr.mxu0 0.0
    %181 = vmatpush2.msra.mxu0 0.0
    %182 = vmatprep.subr.mxu0 0.0
    %183 = vmatpush2.msra.mxu0 0.0
    %184 = vmatprep.subr.mxu0 0.0
    %185 = vmatpush2.msra.mxu0 0.0
    %186 = vmatprep.subr.mxu0 0.0
    %187 = vmatpush2.msra.mxu0 0.0
    %188 = vmatprep.subr.mxu0 0.0
    %189 = vmatpush2.msra.mxu0 0.0
    %190 = vmatprep.subr.mxu0 0.0
    %191 = vmatpush2.msra.mxu0 0.0
    %192 = vmatprep.subr.mxu0 0.0
    %193 = vmatpush2.msra.mxu0 0.0
    %194 = vmatprep.subr.mxu0 0.0
    %195 = vmatpush2.msra.mxu0 0.0
    %196 = vmatprep.subr.mxu0 0.0
    %197 = vmatpush2.msra.mxu0 0.0
    %198 = vmatprep.subr.mxu0 0.0
    %199 = vmatpush2.msra.mxu0 0.0
    %200 = vmatprep.subr.mxu0 0.0
    %201 = vmatpush2.msra.mxu0 0.0
    %202 = vmatprep.subr.mxu0 0.0
    %203 = vmatpush2.msra.mxu0 0.0
    %204 = vmatprep.subr.mxu0 0.0
    %205 = vmatpush2.msra.mxu0 0.0
    %206 = vmatprep.subr.mxu0 0.0
    %207 = vmatpush2.msra.mxu0 0.0
    %208 = vmatprep.subr.mxu0 0.0
    %209 = vmatpush2.msra.mxu0 0.0
    %210 = vmatprep.subr.mxu0 0.0
    %211 = vmatpush2.msra.mxu0 0.0
    %212 = vmatprep.mubr.f32.mxu0 0.0
    %213 = vmatmul.mubr.f32.gmra.mxu0 %v65
    %v214 = vpop.f32.mrf.mxu0
    %v215 = vadd.f32 %v146, %v214
    %v216 = vpop.f32.mrf.mxu0
    %217 = vdwg.mxu0
    %vm218 = vcmp.gt.f32.partialorder %v134, 0.0
    %v219 = vmul.f32 %v134, 0.01
    %v220 = vsel %vm218, %v134, %v219
    %vm221 = vcmp.gt.f32.partialorder %v215, 0.0
    %v222 = vmul.f32 %v215, 0.01
    %v223 = vsel %vm221, %v215, %v222
    %v224 = vld [vmem:[%s5] sm:$0x1]
    %v226 = vlaneseq
    %v227 = vshrl.u32 %v226, 7
    %v228 = vsub.s32 0, %v227
    %v229 = vrot.slane %v224, %v228
    %v231 = vmul.f32 %v220, %v229
    %v232 = vld [vmem:[%s6] sm:$0x1]
    %v234 = vlaneseq
    %v235 = vshrl.u32 %v234, 7
    %v236 = vsub.s32 0, %v235
    %v237 = vrot.slane %v232, %v236
    %v239 = vmul.f32 %v223, %v237
    %v240 = vadd.f32 %v231, %v239
    %v241 = vld [vmem:[%s7] sm:$0xff]
    %v242 = vld [vmem:[%s7 + $0x8] sm:$0xff]
    %v243 = vld [vmem:[%s7 + $0x10] sm:$0xff]
    %v244 = vld [vmem:[%s7 + $0x18] sm:$0xff]
    %v245 = vld [vmem:[%s7 + $0x20] sm:$0xff]
    %v246 = vld [vmem:[%s7 + $0x28] sm:$0xff]
    %v247 = vld [vmem:[%s7 + $0x30] sm:$0xff]
    %v248 = vld [vmem:[%s7 + $0x38] sm:$0xff]
    %s249 = sld [smem:[#allocation2]]
    %v250 = vstv %s249
    %vm251 = vcmask 523264
    %v253 = vsel %vm251, %v240, 0
    %255 = vmatprep.subr.mxu0 0.0
    %256 = vmatpush1.msra.mxu0 0.0
    %257 = vmatprep.subr.mxu0 0.0
    %258 = vmatpush1.msra.mxu0 0.0
    %259 = vmatprep.subr.mxu0 0.0
    %260 = vmatpush1.msra.mxu0 0.0
    %261 = vmatprep.subr.mxu0 0.0
    %262 = vmatpush1.msra.mxu0 0.0
    %263 = vmatprep.subr.mxu0 0.0
    %264 = vmatpush1.msra.mxu0 0.0
    %265 = vmatprep.subr.mxu0 0.0
    %266 = vmatpush1.msra.mxu0 0.0
    %267 = vmatprep.subr.mxu0 0.0
    %268 = vmatpush1.msra.mxu0 0.0
    %269 = vmatprep.subr.mxu0 0.0
    %270 = vmatpush1.msra.mxu0 0.0
    %271 = vmatprep.subr.mxu0 0.0
    %272 = vmatpush1.msra.mxu0 %v248
    %273 = vmatprep.subr.mxu0 0.0
    %274 = vmatpush1.msra.mxu0 %v247
    %275 = vmatprep.subr.mxu0 0.0
    %276 = vmatpush1.msra.mxu0 %v246
    %277 = vmatprep.subr.mxu0 0.0
    %278 = vmatpush1.msra.mxu0 %v245
    %279 = vmatprep.subr.mxu0 0.0
    %280 = vmatpush1.msra.mxu0 %v244
    %281 = vmatprep.subr.mxu0 0.0
    %282 = vmatpush1.msra.mxu0 %v243
    %283 = vmatprep.subr.mxu0 0.0
    %284 = vmatpush1.msra.mxu0 %v242
    %285 = vmatprep.subr.mxu0 0.0
    %286 = vmatpush1.msra.mxu0 %v241
    %287 = vmatprep.subr.mxu0 0.0
    %288 = vmatpush2.msra.mxu0 0.0
    %289 = vmatprep.subr.mxu0 0.0
    %290 = vmatpush2.msra.mxu0 0.0
    %291 = vmatprep.subr.mxu0 0.0
    %292 = vmatpush2.msra.mxu0 0.0
    %293 = vmatprep.subr.mxu0 0.0
    %294 = vmatpush2.msra.mxu0 0.0
    %295 = vmatprep.subr.mxu0 0.0
    %296 = vmatpush2.msra.mxu0 0.0
    %297 = vmatprep.subr.mxu0 0.0
    %298 = vmatpush2.msra.mxu0 0.0
    %299 = vmatprep.subr.mxu0 0.0
    %300 = vmatpush2.msra.mxu0 0.0
    %301 = vmatprep.subr.mxu0 0.0
    %302 = vmatpush2.msra.mxu0 0.0
    %303 = vmatprep.subr.mxu0 0.0
    %304 = vmatpush2.msra.mxu0 0.0
    %305 = vmatprep.subr.mxu0 0.0
    %306 = vmatpush2.msra.mxu0 0.0
    %307 = vmatprep.subr.mxu0 0.0
    %308 = vmatpush2.msra.mxu0 0.0
    %309 = vmatprep.subr.mxu0 0.0
    %310 = vmatpush2.msra.mxu0 0.0
    %311 = vmatprep.subr.mxu0 0.0
    %312 = vmatpush2.msra.mxu0 0.0
    %313 = vmatprep.subr.mxu0 0.0
    %314 = vmatpush2.msra.mxu0 0.0
    %315 = vmatprep.subr.mxu0 0.0
    %316 = vmatpush2.msra.mxu0 0.0
    %317 = vmatprep.subr.mxu0 0.0
    %318 = vmatpush2.msra.mxu0 0.0
    %319 = vmatprep.mubr.f32.mxu0 0.0
    %320 = vmatmul.mubr.f32.gmra.mxu0 %v253
    %v321 = vpop.f32.mrf.mxu0
    %v322 = vadd.f32 %v250, %v321
    %v323 = vpop.f32.mrf.mxu0
    %324 = vdwg.mxu0
    %v325 = vxor.u32 %v322, 2147483648
    %v326 = vmul.f32 %v325, 1.442695
    %v327 = vpow.pop %v326
    %v328 = vadd.f32 %v327, 1.0
    %v329 = vrcp.pop %v328
    %v330 = vmul.f32 1.0, %v329
    %vm331 = vcmask 31744
    %332 = vst.msk [vmem:[%s11] sm:$0xff] %vm331, %v330
    %v333 = vld [vmem:[%s8] sm:$0xf]
    %v335 = vsel %vm331, %v330, 0
    %vm337 = vcmask 1043456
    %v339 = vsel %vm337, %v333, 0
    %341 = vmatprep.subr.mxu0 0.0
    %342 = vmatpush1.msra.mxu0 0.0
    %343 = vmatprep.subr.mxu0 0.0
    %344 = vmatpush1.msra.mxu0 0.0
    %345 = vmatprep.subr.mxu0 0.0
    %346 = vmatpush1.msra.mxu0 0.0
    %347 = vmatprep.subr.mxu0 0.0
    %348 = vmatpush1.msra.mxu0 0.0
    %349 = vmatprep.subr.mxu0 0.0
    %350 = vmatpush1.msra.mxu0 0.0
    %351 = vmatprep.subr.mxu0 0.0
    %352 = vmatpush1.msra.mxu0 0.0
    %353 = vmatprep.subr.mxu0 0.0
    %354 = vmatpush1.msra.mxu0 0.0
    %355 = vmatprep.subr.mxu0 0.0
    %356 = vmatpush1.msra.mxu0 0.0
    %357 = vmatprep.subr.mxu0 0.0
    %358 = vmatpush1.msra.mxu0 0.0
    %359 = vmatprep.subr.mxu0 0.0
    %360 = vmatpush1.msra.mxu0 0.0
    %361 = vmatprep.subr.mxu0 0.0
    %362 = vmatpush1.msra.mxu0 0.0
    %363 = vmatprep.subr.mxu0 0.0
    %364 = vmatpush1.msra.mxu0 0.0
    %365 = vmatprep.subr.mxu0 0.0
    %366 = vmatpush1.msra.mxu0 0.0
    %367 = vmatprep.subr.mxu0 0.0
    %368 = vmatpush1.msra.mxu0 0.0
    %369 = vmatprep.subr.mxu0 0.0
    %370 = vmatpush1.msra.mxu0 0.0
    %371 = vmatprep.subr.mxu0 0.0
    %372 = vmatpush1.msra.mxu0 %v339
    %373 = vmatprep.subr.mxu0 0.0
    %374 = vmatpush2.msra.mxu0 0.0
    %375 = vmatprep.subr.mxu0 0.0
    %376 = vmatpush2.msra.mxu0 0.0
    %377 = vmatprep.subr.mxu0 0.0
    %378 = vmatpush2.msra.mxu0 0.0
    %379 = vmatprep.subr.mxu0 0.0
    %380 = vmatpush2.msra.mxu0 0.0
    %381 = vmatprep.subr.mxu0 0.0
    %382 = vmatpush2.msra.mxu0 0.0
    %383 = vmatprep.subr.mxu0 0.0
    %384 = vmatpush2.msra.mxu0 0.0
    %385 = vmatprep.subr.mxu0 0.0
    %386 = vmatpush2.msra.mxu0 0.0
    %387 = vmatprep.subr.mxu0 0.0
    %388 = vmatpush2.msra.mxu0 0.0
    %389 = vmatprep.subr.mxu0 0.0
    %390 = vmatpush2.msra.mxu0 0.0
    %391 = vmatprep.subr.mxu0 0.0
    %392 = vmatpush2.msra.mxu0 0.0
    %393 = vmatprep.subr.mxu0 0.0
    %394 = vmatpush2.msra.mxu0 0.0
    %395 = vmatprep.subr.mxu0 0.0
    %396 = vmatpush2.msra.mxu0 0.0
    %397 = vmatprep.subr.mxu0 0.0
    %398 = vmatpush2.msra.mxu0 0.0
    %399 = vmatprep.subr.mxu0 0.0
    %400 = vmatpush2.msra.mxu0 0.0
    %401 = vmatprep.subr.mxu0 0.0
    %402 = vmatpush2.msra.mxu0 0.0
    %403 = vmatprep.subr.mxu0 0.0
    %404 = vmatpush2.msra.mxu0 0.0
    %405 = vmatprep.mubr.f32.mxu0 0.0
    %406 = vmatmul.mubr.f32.gmra.mxu0 %v335
    %v407 = vpop.f32.mrf.mxu0
    %v408 = vadd.f32 0.0, %v407
    %v409 = vpop.f32.mrf.mxu0
    %410 = vdwg.mxu0
    %v411 = vsub.f32 %v220, %v223
    %v412 = vmul.f32 %v408, %v411
    %v413 = vadd.f32 %v223, %v412
    %414 = vst.msk [vmem:[#allocation6] sm:$0xff] %vm251, %v413
    // Predicated region
    $region46: #{tpu_custom_call.1} parent=1 // pred_check
      _
    $region47: #{tpu_custom_call.1} parent=1 // pred_check_branch
      %416 = sbr.rel (0) target = $region49
    $region48: #{tpu_custom_call.1} parent=1 // pred_region
      %s418 = ssub.s32 128, 128
      %419 = vsyncadd [#allocation5], %s418
      %s421 = sshll.u32 [#allocation6], 4
      %s422 = int_to_ptr.vmem [resolvable:$true] %s421
      %424 = dma.vmem_to_hbm [thread:$0]  %s422, 128, %s10, [#allocation5]
    $region49: #{tpu_custom_call.1} parent=1 // pred_fallthru
      _
    // Predicated region
    $region50: #{tpu_custom_call.1} parent=1 // pred_check
      _
    $region51: #{tpu_custom_call.1} parent=1 // pred_check_branch
      %426 = sbr.rel (0) target = $region53
    $region52: #{tpu_custom_call.1} parent=1 // pred_region
      _
    $region53: #{tpu_custom_call.1} parent=1 // pred_fallthru
      _
    // Predicated region
    $region54: #{tpu_custom_call.1} parent=1 // pred_check
      _
    $region55: #{tpu_custom_call.1} parent=1 // pred_check_branch
      %428 = sbr.rel (0) target = $region57
    $region56: #{tpu_custom_call.1} parent=1 // pred_region
      %429 = dma.done [#allocation5], 128
    $region57: #{tpu_custom_call.1} parent=1 // pred_fallthru
      _
    // Predicated region
    $region58: #{tpu_custom_call.1} parent=1 // pred_check
      _
    $region59: #{tpu_custom_call.1} parent=1 // pred_check_branch
      %431 = sbr.rel (0) target = $region61
    $region60: #{tpu_custom_call.1} parent=1 // pred_region
      _
    $region61: #{tpu_custom_call.1} parent=1 // pred_fallthru
      _
    %432 = vsyncpa [#allocation4], 1
    %433 = vsyncpa [#allocation5], 1

</llo_original>
